<compile_context>
chip_gen: v7x
topology: tpu7x:2x2x1
jax: 0.10.0
libtpu: 0.0.40
codegen_flags: <defaults>
</compile_context>

<pallas_src>
import functools

import jax
import jax.numpy as jnp
from jax.experimental import pallas as pl
from jax.experimental.pallas import tpu as pltpu

_LANE = 128
_BF16_SUBLANE = 16          # bf16 packs (16, 128) per vreg -> row tiles multiple of 16


def _round_up(x, m):
    return (x + m - 1) // m * m


def _pad_cols(a, target):
    pad = target - a.shape[-1]
    return a if pad == 0 else jnp.pad(a, ((0, 0), (0, pad)))


def _tpu_vmem_caps():
    """Returns (tile_budget_bytes, vmem_limit_bytes, is_small_vmem_chip)."""
    try:
        cap = int(pltpu.get_tpu_info().vmem_capacity_bytes)
    except Exception:  # interpret mode / older jax: assume the smallest (v7x-class)
        cap = 64 * 1024 * 1024
    if cap >= 100 * 1024 * 1024:        # v5e / v6e: 128 MiB physical VMEM
        return 56 * 1024 * 1024, 96 * 1024 * 1024, False
    # v7x-class: 64 MiB physical, 32 MiB scoped default -> stay conservative.
    return 22 * 1024 * 1024, 32 * 1024 * 1024, True


def _balanced_tile(n, max_tile, align, min_steps=1):
    """Pick a tile (multiple of `align`, <= ~max_tile) that splits n into
    >= min_steps near-equal steps with minimal zero padding."""
    max_tile = max(align, max_tile // align * align)
    steps = max(min_steps, pl.cdiv(n, max_tile))
    tile = _round_up(pl.cdiv(n, steps), align)
    return tile, steps * tile           # (tile, padded extent = steps * tile)


# ------------------------- fused small-graph kernel --------------------------
def _gcn_fused_kernel(a_ref, x_ref, w1_ref, b1_ref, w2_ref, b2_ref, o_ref):
    """Both GraphConv layers fully resident in VMEM (bf16 MXU, f32 accum)."""
    a = a_ref[...]                                                    # (N, N) bf16
    # layer 1: relu(A @ (X @ W1) + b1)
    s1 = jnp.dot(x_ref[...], w1_ref[...],
                 preferred_element_type=jnp.float32)                  # (N, Hp)
    h = jnp.dot(a, s1.astype(jnp.bfloat16),
                preferred_element_type=jnp.float32) + b1_ref[...]
    h = jnp.maximum(h, 0.0)                                           # f32
    # layer 2: A @ (h @ W2) + b2
    s2 = jnp.dot(h.astype(jnp.bfloat16), w2_ref[...],
                 preferred_element_type=jnp.float32)                  # (N, Fp)
    out = jnp.dot(a, s2.astype(jnp.bfloat16),
                  preferred_element_type=jnp.float32) + b2_ref[...]
    o_ref[...] = out.astype(o_ref.dtype)


def gcn_fused(A, X, w1, b1, w2, b2):
    N, F_in = X.shape
    H, F_out = w1.shape[1], w2.shape[1]
    Hp, Fp = _round_up(H, _LANE), _round_up(F_out, _LANE)
    _, vmem_limit, _ = _tpu_vmem_caps()

    a16 = A.astype(jnp.bfloat16)
    x16 = X.astype(jnp.bfloat16)
    w1p = _pad_cols(w1, Hp).astype(jnp.bfloat16)
    b1p = _pad_cols(b1, Hp).astype(jnp.float32)
    w2p = jnp.pad(w2, ((0, Hp - H), (0, Fp - F_out))).astype(jnp.bfloat16)
    b2p = _pad_cols(b2, Fp).astype(jnp.float32)

    flops = 2 * N * (F_in * Hp + N * Hp + Hp * Fp + N * Fp)
    bytes_accessed = ((a16.size + x16.size + w1p.size + w2p.size) * 2
                      + (b1p.size + b2p.size + N * Fp) * 4)

    out = pl.pallas_call(
        _gcn_fused_kernel,
        out_shape=jax.ShapeDtypeStruct((N, Fp), X.dtype),
        grid_spec=pltpu.PrefetchScalarGridSpec(
            num_scalar_prefetch=0,
            grid=(1,),
            in_specs=[
                pl.BlockSpec((N, N), lambda i: (0, 0)),      # A
                pl.BlockSpec((N, F_in), lambda i: (0, 0)),   # X
                pl.BlockSpec((F_in, Hp), lambda i: (0, 0)),  # W1
                pl.BlockSpec((1, Hp), lambda i: (0, 0)),     # b1
                pl.BlockSpec((Hp, Fp), lambda i: (0, 0)),    # W2
                pl.BlockSpec((1, Fp), lambda i: (0, 0)),     # b2
            ],
            out_specs=pl.BlockSpec((N, Fp), lambda i: (0, 0)),
        ),
        compiler_params=pltpu.CompilerParams(
            dimension_semantics=("arbitrary",),
            vmem_limit_bytes=vmem_limit,
        ),
        cost_estimate=pl.CostEstimate(flops=flops, transcendentals=0,
                                      bytes_accessed=bytes_accessed),
    )(a16, x16, w1p, b1p, w2p, b2p)
    return out[:, :F_out] if Fp != F_out else out


# --------------------- tiled per-layer aggregation kernel --------------------
def _aggregate_kernel(a_ref, s_ref, b_ref, o_ref, *, activation):
    """o[i] = act(sum_k A[i, k] @ support[k] + b).

    The f32 output block itself is the accumulator: the out BlockSpec returns
    the same block index across the K axis, so the block stays resident in
    VMEM for the whole reduction (no separate scratch, no acc->out copy)."""
    k = pl.program_id(1)

    @pl.when(k == 0)
    def _():
        o_ref[...] = jnp.zeros_like(o_ref)

    o_ref[...] += jnp.dot(a_ref[...], s_ref[...],
                          preferred_element_type=jnp.float32)

    @pl.when(k == pl.num_programs(1) - 1)
    def _():
        out = o_ref[...] + b_ref[...]            # bias folded into finalize
        if activation == "relu":
            out = jnp.maximum(out, 0.0)
        o_ref[...] = out


def graph_conv(A, X, W, b, activation=None, *, tm=None, tk=None):
    """One GraphConv layer: support = X @ W (computed once), then tiled A @ support."""
    N = X.shape[0]
    F_out = W.shape[1]
    Fp = _round_up(F_out, _LANE)
    out_dtype = X.dtype
    budget, vmem_limit, _ = _tpu_vmem_caps()

    # 1) Feature transform, exactly once (hoisted out of the row-tile loop).
    support = jnp.dot(X.astype(jnp.bfloat16),
                      _pad_cols(W, Fp).astype(jnp.bfloat16),
                      preferred_element_type=jnp.float32).astype(jnp.bfloat16)
    bias = _pad_cols(b, Fp).astype(jnp.float32)

    # 2) Tile sizes (generation-aware VMEM budget).
    #    Footprint: 2*tm*tk*2B (A, double-buffered) + 2*tk*Fp*2B (support)
    #             + 2*tm*Fp*4B (resident f32 out block, double-buffered).
    if tk is None:
        tk, Nk = _balanced_tile(N, 2048, _LANE)
    else:
        tk = _round_up(tk, _LANE)
        Nk = _round_up(N, tk)
    if tm is None:
        avail = max(0, budget - 4 * tk * Fp)
        tm_cap = max(_BF16_SUBLANE, avail // (4 * tk + 8 * Fp))
        tm_cap = min(1024, tm_cap)
        # >=2 row steps so v7x can shard the "parallel" row axis across 2 TCs.
        min_steps = 2 if N > _BF16_SUBLANE else 1
        tm, Nr = _balanced_tile(N, tm_cap, _BF16_SUBLANE, min_steps=min_steps)
    else:
        tm = _round_up(tm, _BF16_SUBLANE)
        Nr = _round_up(N, tm)

    # 3) Zero-pad to the tile grid (zeros add nothing to the reduction;
    #    padded output rows are sliced off below).  Handles any N.
    a16 = jnp.pad(A, ((0, Nr - N), (0, Nk - N))).astype(jnp.bfloat16)
    s16 = jnp.pad(support, ((0, Nk - N), (0, 0)))

    n_row_steps = Nr // tm
    flops = 2 * Nr * Nk * Fp
    bytes_accessed = (a16.size * 2 + s16.size * 2 * n_row_steps
                      + Nr * Fp * 4 + bias.size * 4)

    # TODO(synk): if DMA is still exposed on very large graphs, add
    # pipeline_mode=pl.Buffered(3) on the A BlockSpec (and budget 3 buffers),
    # and/or quantize A to int8 (v5e/v6e) / fp8 (v7x) to halve HBM traffic.
    kernel = functools.partial(_aggregate_kernel, activation=activation)
    out = pl.pallas_call(
        kernel,
        out_shape=jax.ShapeDtypeStruct((Nr, Fp), jnp.float32),
        grid_spec=pltpu.PrefetchScalarGridSpec(
            num_scalar_prefetch=0,
            grid=(n_row_steps, Nk // tk),
            in_specs=[
                pl.BlockSpec((tm, tk), lambda i, k: (i, k)),   # A tile (HBM-heavy)
                pl.BlockSpec((tk, Fp), lambda i, k: (k, 0)),   # support tile
                pl.BlockSpec((1, Fp), lambda i, k: (0, 0)),    # bias (tiny, reused)
            ],
            out_specs=pl.BlockSpec((tm, Fp), lambda i, k: (i, 0)),
        ),
        compiler_params=pltpu.CompilerParams(
            dimension_semantics=("parallel", "arbitrary"),
            vmem_limit_bytes=vmem_limit,
        ),
        cost_estimate=pl.CostEstimate(flops=flops, transcendentals=0,
                                      bytes_accessed=bytes_accessed),
    )(a16, s16, bias)
    return out[:N, :F_out].astype(out_dtype)


# ------------------------------- GCN module ----------------------------------
def init_gcn_params(key, n_nodes, emb_dim, dtype=jnp.float32):
    """layer1: GraphConv(N, 2*emb_dim), layer2: GraphConv(2*emb_dim, emb_dim)."""
    k1, k2 = jax.random.split(key)
    w1 = (jax.random.normal(k1, (n_nodes, 2 * emb_dim), dtype)
          * (1.0 / jnp.sqrt(jnp.asarray(n_nodes, dtype))))
    b1 = jnp.zeros((1, 2 * emb_dim), dtype)
    w2 = (jax.random.normal(k2, (2 * emb_dim, emb_dim), dtype)
          * (1.0 / jnp.sqrt(jnp.asarray(2 * emb_dim, dtype))))
    b2 = jnp.zeros((1, emb_dim), dtype)
    return {"w1": w1, "b1": b1, "w2": w2, "b2": b2}


def _fused_working_set_bytes(N, F_in, Hp, Fp):
    # bf16 inputs (A, X, W1, W2) with x2 Pallas buffering, f32 biases/out (x2),
    # plus f32 intermediates (s1, h, s2) materialized inside the kernel.
    inputs = 2 * 2 * (N * N + N * F_in + F_in * Hp + Hp * Fp)
    outs = 2 * 4 * (N * Fp) + 2 * 4 * (Hp + Fp)
    interm = 4 * (2 * N * Hp + N * Fp)
    return inputs + outs + interm


@functools.partial(jax.jit, static_argnames=("force_tiled",))
def gcn_forward(A, features, params, force_tiled=False):
    N, F_in = features.shape
    H, E = params["w1"].shape[1], params["w2"].shape[1]
    Hp, Fp = _round_up(H, _LANE), _round_up(E, _LANE)
    _, _, small_vmem = _tpu_vmem_caps()
    # On v7x the tiled path uses both TensorCores and pipelines DMA, so route
    # medium graphs there; the fused grid=(1,) path is reserved for tiny graphs.
    threshold = (4 if small_vmem else 8) * 1024 * 1024
    small = _fused_working_set_bytes(N, F_in, Hp, Fp) <= threshold
    if small and not force_tiled:
        return gcn_fused(A, features, params["w1"], params["b1"],
                         params["w2"], params["b2"])
    h = graph_conv(A, features, params["w1"], params["b1"], activation="relu")
    return graph_conv(A, h, params["w2"], params["b2"], activation=None)


def gcn_reference(A, X, params, matmul_dtype=None):
    """Pure-JAX reference.  With matmul_dtype=bf16 it mirrors the kernels'
    bf16-operand / f32-accumulation numerics; with None it is full f32."""
    if matmul_dtype is None:
        cast = lambda t: t
    else:
        cast = lambda t: t.astype(matmul_dtype)
    s1 = jnp.dot(cast(X), cast(params["w1"]), preferred_element_type=jnp.float32)
    h = jnp.dot(cast(A), cast(s1), preferred_element_type=jnp.float32) + params["b1"]
    h = jnp.maximum(h, 0.0)
    s2 = jnp.dot(cast(h), cast(params["w2"]), preferred_element_type=jnp.float32)
    return jnp.dot(cast(A), cast(s2), preferred_element_type=jnp.float32) + params["b2"]


# --------------------------------- main ---------------------------------------
if __name__ == "__main__":
    key = jax.random.PRNGKey(0)
    k_adj, k_feat, k_param = jax.random.split(key, 3)

    N = 64          # number of graph nodes (A is N x N; layer1 in_dim = N)
    EMB = 64        # emb_dim -> layer1 out = 128, layer2 out = 64
    dtype = jnp.float32

    # Deterministic symmetric, self-looped, symmetrically-normalized adjacency.
    raw = (jax.random.uniform(k_adj, (N, N)) > 0.8).astype(dtype)
    adj = jnp.minimum(raw + raw.T, 1.0) + jnp.eye(N, dtype=dtype)
    deg = jnp.sum(adj, axis=1)
    d_inv_sqrt = 1.0 / jnp.sqrt(deg)
    A = adj * d_inv_sqrt[:, None] * d_inv_sqrt[None, :]

    # features: (N, N) since layer1 input dim == A.shape[0].
    features = jax.random.normal(k_feat, (N, N), dtype)
    params = init_gcn_params(k_param, N, EMB, dtype)

    # Fused (small-graph) path and tiled (large-graph) path, both exercised.
    out_fused = jax.block_until_ready(gcn_forward(A, features, params))
    out_tiled = jax.block_until_ready(gcn_forward(A, features, params,
                                                  force_tiled=True))

    ref_bf16 = gcn_reference(A, features, params, matmul_dtype=jnp.bfloat16)
    ref_f32 = gcn_reference(A, features, params)

    assert out_fused.shape == (N, EMB) and out_tiled.shape == (N, EMB)
    # Tight check vs bf16-operand / f32-accumulation reference (same numerics).
    assert jnp.allclose(out_fused, ref_bf16, atol=1e-3, rtol=1e-3), "fused mismatch"
    assert jnp.allclose(out_tiled, ref_bf16, atol=1e-3, rtol=1e-3), "tiled mismatch"
    # Loose sanity check vs the full-f32 reference (bf16 MXU operands).
    assert jnp.allclose(out_fused, ref_f32, atol=3e-2, rtol=3e-2), "fused far from f32 ref"
    assert jnp.allclose(out_tiled, ref_f32, atol=3e-2, rtol=3e-2), "tiled far from f32 ref"

    print("KERNEL_OK")
</pallas_src>

<mosaic_0001>
module attributes {stable_mosaic.version = 11 : i64} {
  func.func @_gcn_fused_kernel(%arg0: i32, %arg1: memref<64x64xbf16, #tpu.memory_space<vmem>>, %arg2: memref<64x64xbf16, #tpu.memory_space<vmem>>, %arg3: memref<64x128xbf16, #tpu.memory_space<vmem>>, %arg4: memref<1x128xf32, #tpu.memory_space<vmem>>, %arg5: memref<128x128xbf16, #tpu.memory_space<vmem>>, %arg6: memref<1x128xf32, #tpu.memory_space<vmem>>, %arg7: memref<64x128xf32, #tpu.memory_space<vmem>>) attributes {dimension_semantics = [#tpu.dimension_semantics<arbitrary>], iteration_bounds = array<i64: 1>, scalar_prefetch = 0 : i64, scratch_operands = 0 : i64, tpu.core_type = #tpu.core_type<tc>, window_params = [{pipeline_mode = #tpu.pipeline_mode<synchronous>, transform_indices = @transform_0, window_bounds = array<i64: 64, 64>}, {pipeline_mode = #tpu.pipeline_mode<synchronous>, transform_indices = @transform_1, window_bounds = array<i64: 64, 64>}, {pipeline_mode = #tpu.pipeline_mode<synchronous>, transform_indices = @transform_2, window_bounds = array<i64: 64, 128>}, {pipeline_mode = #tpu.pipeline_mode<synchronous>, transform_indices = @transform_3, window_bounds = array<i64: 1, 128>}, {pipeline_mode = #tpu.pipeline_mode<synchronous>, transform_indices = @transform_4, window_bounds = array<i64: 128, 128>}, {pipeline_mode = #tpu.pipeline_mode<synchronous>, transform_indices = @transform_5, window_bounds = array<i64: 1, 128>}, {pipeline_mode = #tpu.pipeline_mode<synchronous>, transform_indices = @transform_6, window_bounds = array<i64: 64, 128>}]} {
    %c0 = arith.constant 0 : index
    %c0_0 = arith.constant 0 : index
    %0 = vector.load %arg1[%c0, %c0_0] : memref<64x64xbf16, #tpu.memory_space<vmem>>, vector<64x64xbf16>
    %c0_1 = arith.constant 0 : index
    %c0_2 = arith.constant 0 : index
    %1 = vector.load %arg2[%c0_1, %c0_2] : memref<64x64xbf16, #tpu.memory_space<vmem>>, vector<64x64xbf16>
    %c0_3 = arith.constant 0 : index
    %c0_4 = arith.constant 0 : index
    %2 = vector.load %arg3[%c0_3, %c0_4] : memref<64x128xbf16, #tpu.memory_space<vmem>>, vector<64x128xbf16>
    %cst = arith.constant dense<0.000000e+00> : vector<64x128xf32>
    %3 = tpu.matmul %1, %2, %cst {dimension_numbers = #tpu.dot_dimension_numbers<[1], [0], [0], [1], [0, 0, 1, 1], [], []>} : vector<64x64xbf16>, vector<64x128xbf16>, vector<64x128xf32> -> vector<64x128xf32>
    %4 = arith.truncf %3 : vector<64x128xf32> to vector<64x128xbf16>
    %cst_5 = arith.constant dense<0.000000e+00> : vector<64x128xf32>
    %5 = tpu.matmul %0, %4, %cst_5 {dimension_numbers = #tpu.dot_dimension_numbers<[1], [0], [0], [1], [0, 0, 1, 1], [], []>} : vector<64x64xbf16>, vector<64x128xbf16>, vector<64x128xf32> -> vector<64x128xf32>
    %c0_6 = arith.constant 0 : index
    %c0_7 = arith.constant 0 : index
    %6 = vector.load %arg4[%c0_6, %c0_7] : memref<1x128xf32, #tpu.memory_space<vmem>>, vector<1x128xf32>
    %7 = vector.broadcast %6 : vector<1x128xf32> to vector<64x128xf32>
    %8 = arith.addf %5, %7 : vector<64x128xf32>
    %cst_8 = arith.constant 0.000000e+00 : f32
    %9 = vector.broadcast %cst_8 : f32 to vector<64x128xf32>
    %10 = arith.maximumf %8, %9 : vector<64x128xf32>
    %11 = arith.truncf %10 : vector<64x128xf32> to vector<64x128xbf16>
    %c0_9 = arith.constant 0 : index
    %c0_10 = arith.constant 0 : index
    %12 = vector.load %arg5[%c0_9, %c0_10] : memref<128x128xbf16, #tpu.memory_space<vmem>>, vector<128x128xbf16>
    %cst_11 = arith.constant dense<0.000000e+00> : vector<64x128xf32>
    %13 = tpu.matmul %11, %12, %cst_11 {dimension_numbers = #tpu.dot_dimension_numbers<[1], [0], [0], [1], [0, 0, 1, 1], [], []>} : vector<64x128xbf16>, vector<128x128xbf16>, vector<64x128xf32> -> vector<64x128xf32>
    %14 = arith.truncf %13 : vector<64x128xf32> to vector<64x128xbf16>
    %cst_12 = arith.constant dense<0.000000e+00> : vector<64x128xf32>
    %15 = tpu.matmul %0, %14, %cst_12 {dimension_numbers = #tpu.dot_dimension_numbers<[1], [0], [0], [1], [0, 0, 1, 1], [], []>} : vector<64x64xbf16>, vector<64x128xbf16>, vector<64x128xf32> -> vector<64x128xf32>
    %c0_13 = arith.constant 0 : index
    %c0_14 = arith.constant 0 : index
    %16 = vector.load %arg6[%c0_13, %c0_14] : memref<1x128xf32, #tpu.memory_space<vmem>>, vector<1x128xf32>
    %17 = vector.broadcast %16 : vector<1x128xf32> to vector<64x128xf32>
    %18 = arith.addf %15, %17 : vector<64x128xf32>
    %c0_15 = arith.constant 0 : index
    %c0_16 = arith.constant 0 : index
    %19 = vector.load %arg7[%c0_15, %c0_16] : memref<64x128xf32, #tpu.memory_space<vmem>>, vector<64x128xf32>
    tpu.vector_store %arg7[%c0_15, %c0_16], %18 {strides = array<i32>} : memref<64x128xf32, #tpu.memory_space<vmem>>, vector<64x128xf32>,
    return
  }
  func.func @transform_0(%arg0: i32) -> (i32, i32) {
    %c0_i32 = arith.constant 0 : i32
    %c0_i32_0 = arith.constant 0 : i32
    %c0_i32_1 = arith.constant 0 : i32
    return %c0_i32, %c0_i32_0 : i32, i32
  }
  func.func @transform_1(%arg0: i32) -> (i32, i32) {
    %c0_i32 = arith.constant 0 : i32
    %c0_i32_0 = arith.constant 0 : i32
    %c0_i32_1 = arith.constant 0 : i32
    return %c0_i32, %c0_i32_0 : i32, i32
  }
  func.func @transform_2(%arg0: i32) -> (i32, i32) {
    %c0_i32 = arith.constant 0 : i32
    %c0_i32_0 = arith.constant 0 : i32
    %c0_i32_1 = arith.constant 0 : i32
    return %c0_i32, %c0_i32_0 : i32, i32
  }
  func.func @transform_3(%arg0: i32) -> (i32, i32) {
    %c0_i32 = arith.constant 0 : i32
    %c0_i32_0 = arith.constant 0 : i32
    %c0_i32_1 = arith.constant 0 : i32
    return %c0_i32, %c0_i32_0 : i32, i32
  }
  func.func @transform_4(%arg0: i32) -> (i32, i32) {
    %c0_i32 = arith.constant 0 : i32
    %c0_i32_0 = arith.constant 0 : i32
    %c0_i32_1 = arith.constant 0 : i32
    return %c0_i32, %c0_i32_0 : i32, i32
  }
  func.func @transform_5(%arg0: i32) -> (i32, i32) {
    %c0_i32 = arith.constant 0 : i32
    %c0_i32_0 = arith.constant 0 : i32
    %c0_i32_1 = arith.constant 0 : i32
    return %c0_i32, %c0_i32_0 : i32, i32
  }
  func.func @transform_6(%arg0: i32) -> (i32, i32) {
    %c0_i32 = arith.constant 0 : i32
    %c0_i32_0 = arith.constant 0 : i32
    %c0_i32_1 = arith.constant 0 : i32
    return %c0_i32, %c0_i32_0 : i32, i32
  }
}

</mosaic_0001>

<llo_original>
// kernel: gcn_forward.1
$region0: #{gcn_forward.1}
  #allocation0 [shape = 'u32[]', space=smem, size = 0x4, offset = 0x4, fixed_abs, tag = 'smem constant byte address 0x4 - core index']
  #allocation1 [shape = 'u32[144,128]{1,0:T(1,128)}', space=vmem, size = 0x12000, scoped, tag = 'internal scratch']
  %s0 = inlined_call_operand.vmem [shape: bf16[64,64], index: 0, kind: input, shape index: {}]
  %s1 = inlined_call_operand.vmem [shape: bf16[64,64], index: 1, kind: input, shape index: {}]
  %s2 = inlined_call_operand.vmem [shape: bf16[64,128], index: 2, kind: input, shape index: {}]
  %s3 = inlined_call_operand.vmem [shape: f32[1,128], index: 3, kind: input, shape index: {}]
  %s4 = inlined_call_operand.vmem [shape: bf16[128,128], index: 4, kind: input, shape index: {}]
  %s5 = inlined_call_operand.vmem [shape: f32[1,128], index: 5, kind: input, shape index: {}]
  %s6 = inlined_call_operand.hbm [shape: f32[64,128], index: 6, kind: output, shape index: {}]
  %s7 = sld [smem:[#allocation0]]
  $region34: #{gcn_forward.1} parent=0
    _
  %s9 = ssub.s32 1, %s7
  %s10 = scalar_select 0, %s9, %s7
  $region1: #{gcn_forward.1} parent=0
    #allocation2 [shape = 'u8[32768]{0}', space=vmem, size = 0x8000, scoped, tag = 'output window, operand 0, single buffered']
    #allocation3 [shape = 's32[1]{0}', space=sflag, size = 0x4, scoped, tag = 'scoped memory for gcn_forward.1']
    %11 = vsyncpa [#allocation3], 0
    // Predicated region
    $region2: #{gcn_forward.1} parent=1 // pred_check
      _
    $region3: #{gcn_forward.1} parent=1 // pred_check_branch
      %13 = sbr.rel (0) target = $region5
    $region4: #{gcn_forward.1} parent=1 // pred_region
      _
    $region5: #{gcn_forward.1} parent=1 // pred_fallthru
      _
    // Predicated region
    $region6: #{gcn_forward.1} parent=1 // pred_check
      _
    $region7: #{gcn_forward.1} parent=1 // pred_check_branch
      %15 = sbr.rel (0) target = $region9
    $region8: #{gcn_forward.1} parent=1 // pred_region
      _
    $region9: #{gcn_forward.1} parent=1 // pred_fallthru
      _
    // Predicated region
    $region10: #{gcn_forward.1} parent=1 // pred_check
      _
    $region11: #{gcn_forward.1} parent=1 // pred_check_branch
      %17 = sbr.rel (0) target = $region13
    $region12: #{gcn_forward.1} parent=1 // pred_region
      _
    $region13: #{gcn_forward.1} parent=1 // pred_fallthru
      _
    // Predicated region
    $region14: #{gcn_forward.1} parent=1 // pred_check
      _
    $region15: #{gcn_forward.1} parent=1 // pred_check_branch
      %19 = sbr.rel (0) target = $region17
    $region16: #{gcn_forward.1} parent=1 // pred_region
      _
    $region17: #{gcn_forward.1} parent=1 // pred_fallthru
      _
    // Predicated region
    $region18: #{gcn_forward.1} parent=1 // pred_check
      _
    $region19: #{gcn_forward.1} parent=1 // pred_check_branch
      %21 = sbr.rel (0) target = $region21
    $region20: #{gcn_forward.1} parent=1 // pred_region
      _
    $region21: #{gcn_forward.1} parent=1 // pred_fallthru
      _
    // Predicated region
    $region22: #{gcn_forward.1} parent=1 // pred_check
      _
    $region23: #{gcn_forward.1} parent=1 // pred_check_branch
      %23 = sbr.rel (0) target = $region25
    $region24: #{gcn_forward.1} parent=1 // pred_region
      _
    $region25: #{gcn_forward.1} parent=1 // pred_fallthru
      _
    %v25 = vld [vmem:[%s0] sm:$0xf]
    %v26 = vld [vmem:[%s0 + $0x4] sm:$0xf]
    %v27 = vld [vmem:[%s0 + $0x8] sm:$0xf]
    %v28 = vld [vmem:[%s0 + $0xc] sm:$0xf]
    %v29 = vld [vmem:[%s0 + $0x10] sm:$0xf]
    %v30 = vld [vmem:[%s0 + $0x14] sm:$0xf]
    %v31 = vld [vmem:[%s0 + $0x18] sm:$0xf]
    %v32 = vld [vmem:[%s0 + $0x1c] sm:$0xf]
    %v33 = vld [vmem:[%s1] sm:$0xf]
    %v34 = vld [vmem:[%s1 + $0x4] sm:$0xf]
    %v35 = vld [vmem:[%s1 + $0x8] sm:$0xf]
    %v36 = vld [vmem:[%s1 + $0xc] sm:$0xf]
    %v37 = vld [vmem:[%s1 + $0x10] sm:$0xf]
    %v38 = vld [vmem:[%s1 + $0x14] sm:$0xf]
    %v39 = vld [vmem:[%s1 + $0x18] sm:$0xf]
    %v40 = vld [vmem:[%s1 + $0x1c] sm:$0xf]
    %v41 = vld [vmem:[%s2] sm:$0xf]
    %v42 = vld [vmem:[%s2 + $0x4] sm:$0xf]
    %v43 = vld [vmem:[%s2 + $0x8] sm:$0xf]
    %v44 = vld [vmem:[%s2 + $0xc] sm:$0xf]
    %v45 = vld [vmem:[%s2 + $0x10] sm:$0xf]
    %v46 = vld [vmem:[%s2 + $0x14] sm:$0xf]
    %v47 = vld [vmem:[%s2 + $0x18] sm:$0xf]
    %v48 = vld [vmem:[%s2 + $0x1c] sm:$0xf]
    %v57 = vunpack.c.l.b16 %v33
    %v58 = vunpack.c.l.b16 %v34
    %v59 = vunpack.c.l.b16 %v35
    %v60 = vunpack.c.l.b16 %v36
    %v61 = vunpack.c.l.b16 %v37
    %v62 = vunpack.c.l.b16 %v38
    %v63 = vunpack.c.l.b16 %v39
    %v64 = vunpack.c.l.b16 %v40
    %v65 = vpack.c.b16 %v58, %v57
    %v66 = vpack.c.b16 %v60, %v59
    %v67 = vpack.c.b16 %v62, %v61
    %v68 = vpack.c.b16 %v64, %v63
    %v77 = vunpack.c.l.b16 %v41
    %v78 = vunpack.c.l.b16 %v42
    %v79 = vunpack.c.l.b16 %v43
    %v80 = vunpack.c.l.b16 %v44
    %v81 = vunpack.c.l.b16 %v45
    %v82 = vunpack.c.l.b16 %v46
    %v83 = vunpack.c.l.b16 %v47
    %v84 = vunpack.c.l.b16 %v48
    %v85 = vpack.c.b16 %v78, %v77
    %v86 = vpack.c.b16 %v80, %v79
    %v87 = vpack.c.b16 %v82, %v81
    %v88 = vpack.c.b16 %v84, %v83
    %vm93 = vcmask 523264
    %v95 = vsel %vm93, %v65, 0
    %v98 = vsel %vm93, %v66, 0
    %v101 = vsel %vm93, %v67, 0
    %v104 = vsel %vm93, %v68, 0
    %106 = vmatprep.subr.bf16.mxu0 0
    %107 = vmatpush1.bf16.msra.mxu0 %v85
    %108 = vmatprep.subr.bf16.mxu0 0
    %109 = vmatpush1.bf16.msra.mxu0 %v86
    %110 = vmatprep.subr.bf16.mxu0 0
    %111 = vmatpush1.bf16.msra.mxu0 %v87
    %112 = vmatprep.subr.bf16.mxu0 0
    %113 = vmatpush1.bf16.msra.mxu0 %v88
    %114 = vmatprep.subr.bf16.mxu0 0
    %115 = vmatpush1.bf16.msra.mxu0 0
    %116 = vmatprep.subr.bf16.mxu0 0
    %117 = vmatpush1.bf16.msra.mxu0 0
    %118 = vmatprep.subr.bf16.mxu0 0
    %119 = vmatpush1.bf16.msra.mxu0 0
    %120 = vmatprep.subr.bf16.mxu0 0
    %121 = vmatpush1.bf16.msra.mxu0 0
    %122 = vmatprep.subr.bf16.mxu0 0
    %123 = vmatpush1.bf16.msra.mxu0 0
    %124 = vmatprep.subr.bf16.mxu0 0
    %125 = vmatpush1.bf16.msra.mxu0 0
    %126 = vmatprep.subr.bf16.mxu0 0
    %127 = vmatpush1.bf16.msra.mxu0 0
    %128 = vmatprep.subr.bf16.mxu0 0
    %129 = vmatpush1.bf16.msra.mxu0 0
    %130 = vmatprep.subr.bf16.mxu0 0
    %131 = vmatpush1.bf16.msra.mxu0 0
    %132 = vmatprep.subr.bf16.mxu0 0
    %133 = vmatpush1.bf16.msra.mxu0 0
    %134 = vmatprep.subr.bf16.mxu0 0
    %135 = vmatpush1.bf16.msra.mxu0 0
    %136 = vmatprep.subr.bf16.mxu0 0
    %137 = vmatpush1.bf16.msra.mxu0 0
    %138 = vmatprep.mubr.bf16.mxu0 0
    %139 = vmatmul.mubr.bf16.gmra.mrb[0].mxu0 %v95
    %v140 = vpop.f32.mrb[0].mxu0
    %v141 = vadd.f32 0.0, %v140
    %v142 = vpop.f32.mrb[0].mxu0
    %v143 = vpop.f32.mrb[0].mxu0
    %v144 = vadd.f32 0.0, %v143
    %v145 = vpop.f32.mrb[0].mxu0
    %146 = vmatprep.mubr.bf16.mxu0 0
    %147 = vmatmul.mubr.bf16.gmra.mrb[0].mxu0 %v98
    %v148 = vpop.f32.mrb[0].mxu0
    %v149 = vadd.f32 0.0, %v148
    %v150 = vpop.f32.mrb[0].mxu0
    %v151 = vpop.f32.mrb[0].mxu0
    %v152 = vadd.f32 0.0, %v151
    %v153 = vpop.f32.mrb[0].mxu0
    %154 = vmatprep.mubr.bf16.mxu0 0
    %155 = vmatmul.mubr.bf16.gmra.mrb[0].mxu0 %v101
    %v156 = vpop.f32.mrb[0].mxu0
    %v157 = vadd.f32 0.0, %v156
    %v158 = vpop.f32.mrb[0].mxu0
    %v159 = vpop.f32.mrb[0].mxu0
    %v160 = vadd.f32 0.0, %v159
    %v161 = vpop.f32.mrb[0].mxu0
    %162 = vmatprep.mubr.bf16.mxu0 0
    %163 = vmatmul.mubr.bf16.gmra.mrb[0].mxu0 %v104
    %v164 = vpop.f32.mrb[0].mxu0
    %v165 = vadd.f32 0.0, %v164
    %v166 = vpop.f32.mrb[0].mxu0
    %v167 = vpop.f32.mrb[0].mxu0
    %v168 = vadd.f32 0.0, %v167
    %v169 = vpop.f32.mrb[0].mxu0
    %170 = vdwg.mxu0
    %v171 = vpack.c.bf16 %v144, %v141
    %v172 = vpack.c.bf16 %v152, %v149
    %v173 = vpack.c.bf16 %v160, %v157
    %v174 = vpack.c.bf16 %v168, %v165
    %v175 = vld [vmem:[%s3] sm:$0x1]
    %v177 = vlaneseq
    %v178 = vshrl.u32 %v177, 7
    %v179 = vsub.s32 0, %v178
    %v180 = vrot.slane %v175, %v179
    %v190 = vunpack.c.l.b16 %v25
    %v191 = vunpack.c.l.b16 %v26
    %v192 = vunpack.c.l.b16 %v27
    %v193 = vunpack.c.l.b16 %v28
    %v194 = vunpack.c.l.b16 %v29
    %v195 = vunpack.c.l.b16 %v30
    %v196 = vunpack.c.l.b16 %v31
    %v197 = vunpack.c.l.b16 %v32
    %v198 = vpack.c.b16 %v191, %v190
    %v199 = vpack.c.b16 %v193, %v192
    %v200 = vpack.c.b16 %v195, %v194
    %v201 = vpack.c.b16 %v197, %v196
    %v203 = vsel %vm93, %v198, 0
    %v206 = vsel %vm93, %v199, 0
    %v209 = vsel %vm93, %v200, 0
    %v212 = vsel %vm93, %v201, 0
    %214 = vmatprep.subr.bf16.mxu0 0
    %215 = vmatpush1.bf16.msra.mxu0 %v171
    %216 = vmatprep.subr.bf16.mxu0 0
    %217 = vmatpush1.bf16.msra.mxu0 %v172
    %218 = vmatprep.subr.bf16.mxu0 0
    %219 = vmatpush1.bf16.msra.mxu0 %v173
    %220 = vmatprep.subr.bf16.mxu0 0
    %221 = vmatpush1.bf16.msra.mxu0 %v174
    %222 = vmatprep.subr.bf16.mxu0 0
    %223 = vmatpush1.bf16.msra.mxu0 0
    %224 = vmatprep.subr.bf16.mxu0 0
    %225 = vmatpush1.bf16.msra.mxu0 0
    %226 = vmatprep.subr.bf16.mxu0 0
    %227 = vmatpush1.bf16.msra.mxu0 0
    %228 = vmatprep.subr.bf16.mxu0 0
    %229 = vmatpush1.bf16.msra.mxu0 0
    %230 = vmatprep.subr.bf16.mxu0 0
    %231 = vmatpush1.bf16.msra.mxu0 0
    %232 = vmatprep.subr.bf16.mxu0 0
    %233 = vmatpush1.bf16.msra.mxu0 0
    %234 = vmatprep.subr.bf16.mxu0 0
    %235 = vmatpush1.bf16.msra.mxu0 0
    %236 = vmatprep.subr.bf16.mxu0 0
    %237 = vmatpush1.bf16.msra.mxu0 0
    %238 = vmatprep.subr.bf16.mxu0 0
    %239 = vmatpush1.bf16.msra.mxu0 0
    %240 = vmatprep.subr.bf16.mxu0 0
    %241 = vmatpush1.bf16.msra.mxu0 0
    %242 = vmatprep.subr.bf16.mxu0 0
    %243 = vmatpush1.bf16.msra.mxu0 0
    %244 = vmatprep.subr.bf16.mxu0 0
    %245 = vmatpush1.bf16.msra.mxu0 0
    %246 = vmatprep.mubr.bf16.mxu0 0
    %247 = vmatmul.mubr.bf16.gmra.mrb[0].mxu0 %v203
    %v248 = vpop.f32.mrb[0].mxu0
    %v249 = vadd.f32 %v180, %v248
    %v250 = vpop.f32.mrb[0].mxu0
    %v251 = vpop.f32.mrb[0].mxu0
    %v252 = vadd.f32 %v180, %v251
    %v253 = vpop.f32.mrb[0].mxu0
    %254 = vmatprep.mubr.bf16.mxu0 0
    %255 = vmatmul.mubr.bf16.gmra.mrb[0].mxu0 %v206
    %v256 = vpop.f32.mrb[0].mxu0
    %v257 = vadd.f32 %v180, %v256
    %v258 = vpop.f32.mrb[0].mxu0
    %v259 = vpop.f32.mrb[0].mxu0
    %v260 = vadd.f32 %v180, %v259
    %v261 = vpop.f32.mrb[0].mxu0
    %262 = vmatprep.mubr.bf16.mxu0 0
    %263 = vmatmul.mubr.bf16.gmra.mrb[0].mxu0 %v209
    %v264 = vpop.f32.mrb[0].mxu0
    %v265 = vadd.f32 %v180, %v264
    %v266 = vpop.f32.mrb[0].mxu0
    %v267 = vpop.f32.mrb[0].mxu0
    %v268 = vadd.f32 %v180, %v267
    %v269 = vpop.f32.mrb[0].mxu0
    %270 = vmatprep.mubr.bf16.mxu0 0
    %271 = vmatmul.mubr.bf16.gmra.mrb[0].mxu0 %v212
    %v272 = vpop.f32.mrb[0].mxu0
    %v273 = vadd.f32 %v180, %v272
    %v274 = vpop.f32.mrb[0].mxu0
    %v275 = vpop.f32.mrb[0].mxu0
    %v276 = vadd.f32 %v180, %v275
    %v277 = vpop.f32.mrb[0].mxu0
    %278 = vdwg.mxu0
    %v279 = vmax.f32 %v249, 0.0
    %v280 = vmax.f32 %v252, 0.0
    %v281 = vmax.f32 %v257, 0.0
    %v282 = vmax.f32 %v260, 0.0
    %v283 = vmax.f32 %v265, 0.0
    %v284 = vmax.f32 %v268, 0.0
    %v285 = vmax.f32 %v273, 0.0
    %v286 = vmax.f32 %v276, 0.0
    %v287 = vpack.c.bf16 %v280, %v279
    %v288 = vpack.c.bf16 %v282, %v281
    %v289 = vpack.c.bf16 %v284, %v283
    %v290 = vpack.c.bf16 %v286, %v285
    %v291 = vld [vmem:[%s4] sm:$0xf]
    %v292 = vld [vmem:[%s4 + $0x4] sm:$0xf]
    %v293 = vld [vmem:[%s4 + $0x8] sm:$0xf]
    %v294 = vld [vmem:[%s4 + $0xc] sm:$0xf]
    %v295 = vld [vmem:[%s4 + $0x10] sm:$0xf]
    %v296 = vld [vmem:[%s4 + $0x14] sm:$0xf]
    %v297 = vld [vmem:[%s4 + $0x18] sm:$0xf]
    %v298 = vld [vmem:[%s4 + $0x1c] sm:$0xf]
    %v299 = vld [vmem:[%s4 + $0x20] sm:$0xf]
    %v300 = vld [vmem:[%s4 + $0x24] sm:$0xf]
    %v301 = vld [vmem:[%s4 + $0x28] sm:$0xf]
    %v302 = vld [vmem:[%s4 + $0x2c] sm:$0xf]
    %v303 = vld [vmem:[%s4 + $0x30] sm:$0xf]
    %v304 = vld [vmem:[%s4 + $0x34] sm:$0xf]
    %v305 = vld [vmem:[%s4 + $0x38] sm:$0xf]
    %v306 = vld [vmem:[%s4 + $0x3c] sm:$0xf]
    %v323 = vunpack.c.l.b16 %v291
    %v324 = vunpack.c.l.b16 %v292
    %v325 = vunpack.c.l.b16 %v293
    %v326 = vunpack.c.l.b16 %v294
    %v327 = vunpack.c.l.b16 %v295
    %v328 = vunpack.c.l.b16 %v296
    %v329 = vunpack.c.l.b16 %v297
    %v330 = vunpack.c.l.b16 %v298
    %v331 = vunpack.c.l.b16 %v299
    %v332 = vunpack.c.l.b16 %v300
    %v333 = vunpack.c.l.b16 %v301
    %v334 = vunpack.c.l.b16 %v302
    %v335 = vunpack.c.l.b16 %v303
    %v336 = vunpack.c.l.b16 %v304
    %v337 = vunpack.c.l.b16 %v305
    %v338 = vunpack.c.l.b16 %v306
    %v339 = vpack.c.b16 %v324, %v323
    %v340 = vpack.c.b16 %v326, %v325
    %v341 = vpack.c.b16 %v328, %v327
    %v342 = vpack.c.b16 %v330, %v329
    %v343 = vpack.c.b16 %v332, %v331
    %v344 = vpack.c.b16 %v334, %v333
    %v345 = vpack.c.b16 %v336, %v335
    %v346 = vpack.c.b16 %v338, %v337
    %355 = vmatprep.subr.bf16.mxu0 0
    %356 = vmatpush1.bf16.msra.mxu0 %v339
    %357 = vmatprep.subr.bf16.mxu0 0
    %358 = vmatpush1.bf16.msra.mxu0 %v340
    %359 = vmatprep.subr.bf16.mxu0 0
    %360 = vmatpush1.bf16.msra.mxu0 %v341
    %361 = vmatprep.subr.bf16.mxu0 0
    %362 = vmatpush1.bf16.msra.mxu0 %v342
    %363 = vmatprep.subr.bf16.mxu0 0
    %364 = vmatpush1.bf16.msra.mxu0 %v343
    %365 = vmatprep.subr.bf16.mxu0 0
    %366 = vmatpush1.bf16.msra.mxu0 %v344
    %367 = vmatprep.subr.bf16.mxu0 0
    %368 = vmatpush1.bf16.msra.mxu0 %v345
    %369 = vmatprep.subr.bf16.mxu0 0
    %370 = vmatpush1.bf16.msra.mxu0 %v346
    %371 = vmatprep.subr.bf16.mxu0 0
    %372 = vmatpush1.bf16.msra.mxu0 0
    %373 = vmatprep.subr.bf16.mxu0 0
    %374 = vmatpush1.bf16.msra.mxu0 0
    %375 = vmatprep.subr.bf16.mxu0 0
    %376 = vmatpush1.bf16.msra.mxu0 0
    %377 = vmatprep.subr.bf16.mxu0 0
    %378 = vmatpush1.bf16.msra.mxu0 0
    %379 = vmatprep.subr.bf16.mxu0 0
    %380 = vmatpush1.bf16.msra.mxu0 0
    %381 = vmatprep.subr.bf16.mxu0 0
    %382 = vmatpush1.bf16.msra.mxu0 0
    %383 = vmatprep.subr.bf16.mxu0 0
    %384 = vmatpush1.bf16.msra.mxu0 0
    %385 = vmatprep.subr.bf16.mxu0 0
    %386 = vmatpush1.bf16.msra.mxu0 0
    %387 = vmatprep.mubr.bf16.mxu0 0
    %388 = vmatmul.mubr.bf16.gmra.mrb[0].mxu0 %v287
    %v389 = vpop.f32.mrb[0].mxu0
    %v390 = vadd.f32 0.0, %v389
    %v391 = vpop.f32.mrb[0].mxu0
    %v392 = vpop.f32.mrb[0].mxu0
    %v393 = vadd.f32 0.0, %v392
    %v394 = vpop.f32.mrb[0].mxu0
    %395 = vmatprep.mubr.bf16.mxu0 0
    %396 = vmatmul.mubr.bf16.gmra.mrb[0].mxu0 %v288
    %v397 = vpop.f32.mrb[0].mxu0
    %v398 = vadd.f32 0.0, %v397
    %v399 = vpop.f32.mrb[0].mxu0
    %v400 = vpop.f32.mrb[0].mxu0
    %v401 = vadd.f32 0.0, %v400
    %v402 = vpop.f32.mrb[0].mxu0
    %403 = vmatprep.mubr.bf16.mxu0 0
    %404 = vmatmul.mubr.bf16.gmra.mrb[0].mxu0 %v289
    %v405 = vpop.f32.mrb[0].mxu0
    %v406 = vadd.f32 0.0, %v405
    %v407 = vpop.f32.mrb[0].mxu0
    %v408 = vpop.f32.mrb[0].mxu0
    %v409 = vadd.f32 0.0, %v408
    %v410 = vpop.f32.mrb[0].mxu0
    %411 = vmatprep.mubr.bf16.mxu0 0
    %412 = vmatmul.mubr.bf16.gmra.mrb[0].mxu0 %v290
    %v413 = vpop.f32.mrb[0].mxu0
    %v414 = vadd.f32 0.0, %v413
    %v415 = vpop.f32.mrb[0].mxu0
    %v416 = vpop.f32.mrb[0].mxu0
    %v417 = vadd.f32 0.0, %v416
    %v418 = vpop.f32.mrb[0].mxu0
    %419 = vdwg.mxu0
    %v420 = vpack.c.bf16 %v393, %v390
    %v421 = vpack.c.bf16 %v401, %v398
    %v422 = vpack.c.bf16 %v409, %v406
    %v423 = vpack.c.bf16 %v417, %v414
    %v424 = vld [vmem:[%s5] sm:$0x1]
    %v426 = vlaneseq
    %v427 = vshrl.u32 %v426, 7
    %v428 = vsub.s32 0, %v427
    %v429 = vrot.slane %v424, %v428
    %431 = vmatprep.subr.bf16.mxu0 0
    %432 = vmatpush1.bf16.msra.mxu0 %v420
    %433 = vmatprep.subr.bf16.mxu0 0
    %434 = vmatpush1.bf16.msra.mxu0 %v421
    %435 = vmatprep.subr.bf16.mxu0 0
    %436 = vmatpush1.bf16.msra.mxu0 %v422
    %437 = vmatprep.subr.bf16.mxu0 0
    %438 = vmatpush1.bf16.msra.mxu0 %v423
    %439 = vmatprep.subr.bf16.mxu0 0
    %440 = vmatpush1.bf16.msra.mxu0 0
    %441 = vmatprep.subr.bf16.mxu0 0
    %442 = vmatpush1.bf16.msra.mxu0 0
    %443 = vmatprep.subr.bf16.mxu0 0
    %444 = vmatpush1.bf16.msra.mxu0 0
    %445 = vmatprep.subr.bf16.mxu0 0
    %446 = vmatpush1.bf16.msra.mxu0 0
    %447 = vmatprep.subr.bf16.mxu0 0
    %448 = vmatpush1.bf16.msra.mxu0 0
    %449 = vmatprep.subr.bf16.mxu0 0
    %450 = vmatpush1.bf16.msra.mxu0 0
    %451 = vmatprep.subr.bf16.mxu0 0
    %452 = vmatpush1.bf16.msra.mxu0 0
    %453 = vmatprep.subr.bf16.mxu0 0
    %454 = vmatpush1.bf16.msra.mxu0 0
    %455 = vmatprep.subr.bf16.mxu0 0
    %456 = vmatpush1.bf16.msra.mxu0 0
    %457 = vmatprep.subr.bf16.mxu0 0
    %458 = vmatpush1.bf16.msra.mxu0 0
    %459 = vmatprep.subr.bf16.mxu0 0
    %460 = vmatpush1.bf16.msra.mxu0 0
    %461 = vmatprep.subr.bf16.mxu0 0
    %462 = vmatpush1.bf16.msra.mxu0 0
    %463 = vmatprep.mubr.bf16.mxu0 0
    %464 = vmatmul.mubr.bf16.gmra.mrb[0].mxu0 %v203
    %v465 = vpop.f32.mrb[0].mxu0
    %v466 = vadd.f32 %v429, %v465
    %v467 = vpop.f32.mrb[0].mxu0
    %v468 = vpop.f32.mrb[0].mxu0
    %v469 = vadd.f32 %v429, %v468
    %v470 = vpop.f32.mrb[0].mxu0
    %471 = vmatprep.mubr.bf16.mxu0 0
    %472 = vmatmul.mubr.bf16.gmra.mrb[0].mxu0 %v206
    %v473 = vpop.f32.mrb[0].mxu0
    %v474 = vadd.f32 %v429, %v473
    %v475 = vpop.f32.mrb[0].mxu0
    %v476 = vpop.f32.mrb[0].mxu0
    %v477 = vadd.f32 %v429, %v476
    %v478 = vpop.f32.mrb[0].mxu0
    %479 = vmatprep.mubr.bf16.mxu0 0
    %480 = vmatmul.mubr.bf16.gmra.mrb[0].mxu0 %v209
    %v481 = vpop.f32.mrb[0].mxu0
    %v482 = vadd.f32 %v429, %v481
    %v483 = vpop.f32.mrb[0].mxu0
    %v484 = vpop.f32.mrb[0].mxu0
    %v485 = vadd.f32 %v429, %v484
    %v486 = vpop.f32.mrb[0].mxu0
    %487 = vmatprep.mubr.bf16.mxu0 0
    %488 = vmatmul.mubr.bf16.gmra.mrb[0].mxu0 %v212
    %v489 = vpop.f32.mrb[0].mxu0
    %v490 = vadd.f32 %v429, %v489
    %v491 = vpop.f32.mrb[0].mxu0
    %v492 = vpop.f32.mrb[0].mxu0
    %v493 = vadd.f32 %v429, %v492
    %v494 = vpop.f32.mrb[0].mxu0
    %495 = vdwg.mxu0
    %496 = vst [vmem:[#allocation2] sm:$0xff] %v466
    %497 = vst [vmem:[#allocation2 + $0x8] sm:$0xff] %v469
    %498 = vst [vmem:[#allocation2 + $0x10] sm:$0xff] %v474
    %499 = vst [vmem:[#allocation2 + $0x18] sm:$0xff] %v477
    %500 = vst [vmem:[#allocation2 + $0x20] sm:$0xff] %v482
    %501 = vst [vmem:[#allocation2 + $0x28] sm:$0xff] %v485
    %502 = vst [vmem:[#allocation2 + $0x30] sm:$0xff] %v490
    %503 = vst [vmem:[#allocation2 + $0x38] sm:$0xff] %v493
    // Predicated region
    $region26: #{gcn_forward.1} parent=1 // pred_check
      _
    $region27: #{gcn_forward.1} parent=1 // pred_check_branch
      %505 = sbr.rel (0) target = $region29
    $region28: #{gcn_forward.1} parent=1 // pred_region
      %s507 = ssub.s32 1024, 1024
      %508 = vsyncadd [#allocation3], %s507
      %s509 = sshll.u32 [#allocation2], 4
      %s510 = int_to_ptr.vmem [resolvable:$true] %s509
      %515 = dma.vmem_to_hbm [thread:$0]  %s510, 1024, %s6, [#allocation3], 128, 128, 8
    $region29: #{gcn_forward.1} parent=1 // pred_fallthru
      _
    // Predicated region
    $region30: #{gcn_forward.1} parent=1 // pred_check
      _
    $region31: #{gcn_forward.1} parent=1 // pred_check_branch
      %517 = sbr.rel (0) target = $region33
    $region32: #{gcn_forward.1} parent=1 // pred_region
      %518 = dma.done [#allocation3], 1024
    $region33: #{gcn_forward.1} parent=1 // pred_fallthru
      _
    %519 = vsyncpa [#allocation3], 1

</llo_original>
